<compile_context>
chip_gen: v7x
topology: tpu7x:2x2x1
jax: 0.10.0
libtpu: 0.0.40
codegen_flags: <defaults>
</compile_context>

<pallas_src>
import numpy as np
import jax
import jax.numpy as jnp
from jax.experimental import pallas as pl
from jax.experimental.pallas import tpu as pltpu


# ------------------------------ static helpers -------------------------------

def _bn_fold(gamma, beta, mean, var, eps=1e-5):
    scale = gamma / jnp.sqrt(var + eps)
    shift = beta - mean * scale
    return scale.astype(jnp.float32), shift.astype(jnp.float32)


def _bilinear_matrix(out_size, in_size):
    # PyTorch F.interpolate(mode='bilinear', align_corners=False) weights.
    scale = in_size / out_size
    i = jnp.arange(out_size, dtype=jnp.float32)
    src = jnp.maximum((i + 0.5) * scale - 0.5, 0.0)
    i0 = jnp.minimum(jnp.floor(src).astype(jnp.int32), in_size - 1)
    i1 = jnp.minimum(i0 + 1, in_size - 1)
    frac = src - i0.astype(jnp.float32)
    return ((1.0 - frac)[:, None] * jax.nn.one_hot(i0, in_size, dtype=jnp.float32)
            + frac[:, None] * jax.nn.one_hot(i1, in_size, dtype=jnp.float32))


def _tap_masks(hs, ws, n):
    # mask[t, n*hs*ws + p*ws + s] == 1 iff neighbour (p+dy, s+dx) of tap t lies
    # inside the image; this also zeroes cross-image leakage of the circular roll.
    p = np.arange(hs)[:, None]
    s = np.arange(ws)[None, :]
    rows = []
    for dy in (-1, 0, 1):
        for dx in (-1, 0, 1):
            ok = (p + dy >= 0) & (p + dy < hs) & (s + dx >= 0) & (s + dx < ws)
            rows.append(np.tile(ok.astype(np.float32).reshape(-1), n))
    return jnp.asarray(np.stack(rows))          # (9, n*hs*ws) float32


# ------------------------------- fused kernel --------------------------------

def _make_kernel(Cm, Ws, Ltot):
    def kernel(x_ref, skip_ref, kbd_ref, s1_ref, t1_ref, w1_ref,
               s2_ref, t2_ref, w2s_ref, mask_ref, out_ref, stk_ref):
        # x_ref:    (Cm, N*Hx*Wx)      low-res features, lane-dense, matmul dtype
        # kbd_ref:  (N*Hx*Wx, N*L)     block-diag kron(Wh, Ww)^T, matmul dtype
        # skip_ref: (Cs, N*L)          skip features, CHW-flat, f32
        # s1/t1:    (Cs, 1)  s2/t2:    (Cm, 1)   folded BN scale/shift, f32
        # w1_ref:   (Cm, Cs)           1x1 conv weight, matmul dtype
        # w2s_ref:  (Co, 9*Cm)         3x3 conv weight, tap-major stacked
        # mask_ref: (9, N*L)           per-tap edge masks, f32
        # out_ref:  (Co, N*L)          lane-dense output, f32
        # stk_ref:  (9*Cm, N*L)        VMEM scratch: stacked shifted windows

        # --- bilinear upsample: one MXU matmul for the whole batch ---
        xu = jnp.dot(x_ref[...], kbd_ref[...],
                     preferred_element_type=jnp.float32)               # (Cm, Ltot)

        # --- bottleneck: BN + ReLU + 1x1 conv on skip ---
        z = jnp.maximum(skip_ref[...] * s1_ref[...] + t1_ref[...], 0.0)  # (Cs, Ltot)
        sk = jnp.dot(w1_ref[...], z.astype(w1_ref.dtype),
                     preferred_element_type=jnp.float32)               # (Cm, Ltot)

        # --- residual add + BN + ReLU (all f32 VPU work) ---
        y = jnp.maximum((xu + sk) * s2_ref[...] + t2_ref[...], 0.0)     # (Cm, Ltot)

        # --- 3x3 conv (pad=1): build the 9 masked shifted windows with XLU
        #     rolls, store them lane-aligned into the stacked scratch, then do
        #     a single (Co, 9*Cm) x (9*Cm, Ltot) MXU matmul. ---
        for t in range(9):
            dy, dx = t // 3 - 1, t % 3 - 1
            k = dy * Ws + dx
            if k == 0:
                tap = y                                                  # centre tap
            else:
                m = mask_ref[pl.ds(t, 1), :]                             # (1, Ltot)
                tap = pltpu.roll(y, shift=(-k) % Ltot, axis=1) * m
            stk_ref[pl.ds(t * Cm, Cm), :] = tap.astype(stk_ref.dtype)

        out = jnp.dot(w2s_ref[...], stk_ref[...],
                      preferred_element_type=jnp.float32)                # (Co, Ltot)
        out_ref[...] = out.astype(out_ref.dtype)

    return kernel


# ------------------------------- glue / wrapper -------------------------------

def upsample_forward(x_nchw, skip_nchw, params, matmul_dtype=jnp.bfloat16):
    """_Upsample.forward.  x_nchw: (N, Cm, Hx, Wx); skip_nchw: (N, Cs, Hs, Ws)."""
    N, Cm, Hx, Wx = x_nchw.shape
    _, Cs, Hs, Ws = skip_nchw.shape
    Co = params["w2_oihw"].shape[0]
    L = Hs * Ws
    Ltot = N * L

    s1, t1 = _bn_fold(params["g1"], params["b1"], params["m1"], params["v1"])
    s2, t2 = _bn_fold(params["g2"], params["b2"], params["m2"], params["v2"])

    # 1x1 conv weight (Cm, Cs); 3x3 conv weight stacked tap-major (Co, 9*Cm).
    w1 = params["w1_oihw"][:, :, 0, 0].astype(matmul_dtype)
    w2s = (jnp.transpose(params["w2_oihw"], (2, 3, 0, 1))       # (3,3,Co,Cm)
              .reshape(9, Co, Cm)
              .transpose(1, 0, 2)                               # (Co,9,Cm)
              .reshape(Co, 9 * Cm)
              .astype(matmul_dtype))

    # Block-diagonal kron(Wh, Ww)^T: the whole-batch upsample as one matmul.
    k1 = jnp.kron(_bilinear_matrix(Hs, Hx), _bilinear_matrix(Ws, Wx)).T  # (HxWx, L)
    kbd = jax.scipy.linalg.block_diag(*([k1] * N)).astype(matmul_dtype)  # (N*HxWx, N*L)

    masks = _tap_masks(Hs, Ws, N)                                        # (9, Ltot)

    # Free layout plumbing (reshape/transpose) stays outside the kernel.
    x2 = (jnp.transpose(x_nchw, (1, 0, 2, 3))
             .reshape(Cm, N * Hx * Wx).astype(matmul_dtype))             # (Cm, N*HxWx)
    skip2 = (jnp.transpose(skip_nchw, (1, 0, 2, 3))
                .reshape(Cs, Ltot).astype(jnp.float32))                  # (Cs, Ltot)

    kernel = _make_kernel(Cm, Ws, Ltot)

    out2 = pl.pallas_call(
        kernel,
        out_shape=jax.ShapeDtypeStruct((Co, Ltot), jnp.float32),
        scratch_shapes=[pltpu.VMEM((9 * Cm, Ltot), matmul_dtype)],
        compiler_params=pltpu.CompilerParams(vmem_limit_bytes=32 * 1024 * 1024),
    )(x2, skip2, kbd, s1[:, None], t1[:, None], w1,
      s2[:, None], t2[:, None], w2s, masks)

    # (Co, N*Hs*Ws) -> NCHW
    return jnp.transpose(out2.reshape(Co, N, Hs, Ws), (1, 0, 2, 3))


# ----------------------------- pure-JAX reference -----------------------------

def _reference_forward(x, skip, params):
    hp = jax.lax.Precision.HIGHEST

    def bn(v, g, b, m, var):
        sc = g / jnp.sqrt(var + 1e-5)
        return v * sc[None, :, None, None] + (b - m * sc)[None, :, None, None]

    N, Cm, Hx, Wx = x.shape
    _, Cs, Hs, Ws = skip.shape
    s = jnp.maximum(bn(skip, params["g1"], params["b1"], params["m1"], params["v1"]), 0.0)
    s = jax.lax.conv_general_dilated(s, params["w1_oihw"], (1, 1), "VALID",
                                     dimension_numbers=("NCHW", "OIHW", "NCHW"),
                                     precision=hp)
    wh = _bilinear_matrix(Hs, Hx)
    ww = _bilinear_matrix(Ws, Wx)
    xu = jnp.einsum("ph,nchw,qw->ncpq", wh, x, ww, precision=hp)
    y = xu + s
    y = jnp.maximum(bn(y, params["g2"], params["b2"], params["m2"], params["v2"]), 0.0)
    y = jax.lax.conv_general_dilated(y, params["w2_oihw"], (1, 1), ((1, 1), (1, 1)),
                                     dimension_numbers=("NCHW", "OIHW", "NCHW"),
                                     precision=hp)
    return y


# ----------------------------------- main -------------------------------------

if __name__ == "__main__":
    key = jax.random.PRNGKey(0)
    # num_maps_in=8, skip_maps_in=16, num_maps_out=8
    N, Cm, Cs, Co = 2, 8, 16, 8
    Hx, Wx, Hs, Ws = 8, 8, 16, 16

    ks = jax.random.split(key, 12)
    params = dict(
        g1=jax.random.uniform(ks[0], (Cs,), minval=0.5, maxval=1.5),
        b1=0.1 * jax.random.normal(ks[1], (Cs,)),
        m1=0.1 * jax.random.normal(ks[2], (Cs,)),
        v1=jax.random.uniform(ks[3], (Cs,), minval=0.5, maxval=1.5),
        w1_oihw=0.2 * jax.random.normal(ks[4], (Cm, Cs, 1, 1)),
        g2=jax.random.uniform(ks[5], (Cm,), minval=0.5, maxval=1.5),
        b2=0.1 * jax.random.normal(ks[6], (Cm,)),
        m2=0.1 * jax.random.normal(ks[7], (Cm,)),
        v2=jax.random.uniform(ks[8], (Cm,), minval=0.5, maxval=1.5),
        w2_oihw=0.2 * jax.random.normal(ks[9], (Co, Cm, 3, 3)),
    )
    x = jax.random.normal(ks[10], (N, Cm, Hx, Wx), dtype=jnp.float32)
    skip = jax.random.normal(ks[11], (N, Cs, Hs, Ws), dtype=jnp.float32)

    out = jax.block_until_ready(upsample_forward(x, skip, params))
    ref = jax.block_until_ready(_reference_forward(x, skip, params))

    assert out.shape == (N, Co, Hs, Ws), out.shape
    max_err = float(jnp.max(jnp.abs(out - ref)))
    # bf16 matmul operands (per perf review) -> bf16-level tolerance against the
    # full-precision reference.  Use matmul_dtype=jnp.float32 for ~1e-3 agreement.
    assert jnp.allclose(out, ref, atol=6e-2, rtol=6e-2), f"max_err={max_err}"
    print("KERNEL_OK")
</pallas_src>

<mosaic_0001>
module attributes {stable_mosaic.version = 11 : i64} {
  func.func @kernel(%arg0: memref<8x128xbf16, #tpu.memory_space<vmem>>, %arg1: memref<16x512xf32, #tpu.memory_space<vmem>>, %arg2: memref<128x512xbf16, #tpu.memory_space<vmem>>, %arg3: memref<16x1xf32, #tpu.memory_space<vmem>>, %arg4: memref<16x1xf32, #tpu.memory_space<vmem>>, %arg5: memref<8x16xbf16, #tpu.memory_space<vmem>>, %arg6: memref<8x1xf32, #tpu.memory_space<vmem>>, %arg7: memref<8x1xf32, #tpu.memory_space<vmem>>, %arg8: memref<8x72xbf16, #tpu.memory_space<vmem>>, %arg9: memref<9x512xf32, #tpu.memory_space<vmem>>, %arg10: memref<8x512xf32, #tpu.memory_space<vmem>>, %arg11: memref<72x512xbf16, #tpu.memory_space<vmem>>) attributes {dimension_semantics = [], scalar_prefetch = 0 : i64, scratch_operands = 1 : i64, tpu.core_type = #tpu.core_type<tc>} {
    %c0 = arith.constant 0 : index
    %c0_0 = arith.constant 0 : index
    %0 = vector.load %arg0[%c0, %c0_0] : memref<8x128xbf16, #tpu.memory_space<vmem>>, vector<8x128xbf16>
    %c0_1 = arith.constant 0 : index
    %c0_2 = arith.constant 0 : index
    %1 = vector.load %arg2[%c0_1, %c0_2] : memref<128x512xbf16, #tpu.memory_space<vmem>>, vector<128x512xbf16>
    %cst = arith.constant dense<0.000000e+00> : vector<8x512xf32>
    %2 = tpu.matmul %0, %1, %cst {dimension_numbers = #tpu.dot_dimension_numbers<[1], [0], [0], [1], [0, 0, 1, 1], [], []>} : vector<8x128xbf16>, vector<128x512xbf16>, vector<8x512xf32> -> vector<8x512xf32>
    %c0_3 = arith.constant 0 : index
    %c0_4 = arith.constant 0 : index
    %3 = vector.load %arg1[%c0_3, %c0_4] : memref<16x512xf32, #tpu.memory_space<vmem>>, vector<16x512xf32>
    %c0_5 = arith.constant 0 : index
    %c0_6 = arith.constant 0 : index
    %4 = vector.load %arg3[%c0_5, %c0_6] : memref<16x1xf32, #tpu.memory_space<vmem>>, vector<16x1xf32>
    %5 = vector.broadcast %4 : vector<16x1xf32> to vector<16x512xf32>
    %6 = arith.mulf %3, %5 : vector<16x512xf32>
    %c0_7 = arith.constant 0 : index
    %c0_8 = arith.constant 0 : index
    %7 = vector.load %arg4[%c0_7, %c0_8] : memref<16x1xf32, #tpu.memory_space<vmem>>, vector<16x1xf32>
    %8 = vector.broadcast %7 : vector<16x1xf32> to vector<16x512xf32>
    %9 = arith.addf %6, %8 : vector<16x512xf32>
    %cst_9 = arith.constant 0.000000e+00 : f32
    %10 = vector.broadcast %cst_9 : f32 to vector<16x512xf32>
    %11 = arith.maximumf %9, %10 : vector<16x512xf32>
    %c0_10 = arith.constant 0 : index
    %c0_11 = arith.constant 0 : index
    %12 = vector.load %arg5[%c0_10, %c0_11] : memref<8x16xbf16, #tpu.memory_space<vmem>>, vector<8x16xbf16>
    %13 = arith.truncf %11 : vector<16x512xf32> to vector<16x512xbf16>
    %cst_12 = arith.constant dense<0.000000e+00> : vector<8x512xf32>
    %14 = tpu.matmul %12, %13, %cst_12 {dimension_numbers = #tpu.dot_dimension_numbers<[1], [0], [0], [1], [0, 0, 1, 1], [], []>} : vector<8x16xbf16>, vector<16x512xbf16>, vector<8x512xf32> -> vector<8x512xf32>
    %15 = arith.addf %2, %14 : vector<8x512xf32>
    %c0_13 = arith.constant 0 : index
    %c0_14 = arith.constant 0 : index
    %16 = vector.load %arg6[%c0_13, %c0_14] : memref<8x1xf32, #tpu.memory_space<vmem>>, vector<8x1xf32>
    %17 = vector.broadcast %16 : vector<8x1xf32> to vector<8x512xf32>
    %18 = arith.mulf %15, %17 : vector<8x512xf32>
    %c0_15 = arith.constant 0 : index
    %c0_16 = arith.constant 0 : index
    %19 = vector.load %arg7[%c0_15, %c0_16] : memref<8x1xf32, #tpu.memory_space<vmem>>, vector<8x1xf32>
    %20 = vector.broadcast %19 : vector<8x1xf32> to vector<8x512xf32>
    %21 = arith.addf %18, %20 : vector<8x512xf32>
    %cst_17 = arith.constant 0.000000e+00 : f32
    %22 = vector.broadcast %cst_17 : f32 to vector<8x512xf32>
    %23 = arith.maximumf %21, %22 : vector<8x512xf32>
    %c0_18 = arith.constant 0 : index
    %c0_19 = arith.constant 0 : index
    %24 = vector.load %arg9[%c0_18, %c0_19] : memref<9x512xf32, #tpu.memory_space<vmem>>, vector<1x512xf32>
    %c17_i32 = arith.constant 17 : i32
    %25 = tpu.dynamic_rotate %23 by %c17_i32 dim 1 : vector<8x512xf32>, i32 -> vector<8x512xf32>
    %26 = vector.broadcast %24 : vector<1x512xf32> to vector<8x512xf32>
    %27 = arith.mulf %25, %26 : vector<8x512xf32>
    %28 = arith.truncf %27 : vector<8x512xf32> to vector<8x512xbf16>
    %c0_20 = arith.constant 0 : index
    %c0_21 = arith.constant 0 : index
    %29 = vector.load %arg11[%c0_20, %c0_21] : memref<72x512xbf16, #tpu.memory_space<vmem>>, vector<8x512xbf16>
    tpu.vector_store %arg11[%c0_20, %c0_21], %28 {strides = array<i32>} : memref<72x512xbf16, #tpu.memory_space<vmem>>, vector<8x512xbf16>,
    %c1 = arith.constant 1 : index
    %c0_22 = arith.constant 0 : index
    %30 = vector.load %arg9[%c1, %c0_22] : memref<9x512xf32, #tpu.memory_space<vmem>>, vector<1x512xf32>
    %c16_i32 = arith.constant 16 : i32
    %31 = tpu.dynamic_rotate %23 by %c16_i32 dim 1 : vector<8x512xf32>, i32 -> vector<8x512xf32>
    %32 = vector.broadcast %30 : vector<1x512xf32> to vector<8x512xf32>
    %33 = arith.mulf %31, %32 : vector<8x512xf32>
    %34 = arith.truncf %33 : vector<8x512xf32> to vector<8x512xbf16>
    %c8 = arith.constant 8 : index
    %c0_23 = arith.constant 0 : index
    %35 = vector.load %arg11[%c8, %c0_23] : memref<72x512xbf16, #tpu.memory_space<vmem>>, vector<8x512xbf16>
    tpu.vector_store %arg11[%c8, %c0_23], %34 {strides = array<i32>} : memref<72x512xbf16, #tpu.memory_space<vmem>>, vector<8x512xbf16>,
    %c2 = arith.constant 2 : index
    %c0_24 = arith.constant 0 : index
    %36 = vector.load %arg9[%c2, %c0_24] : memref<9x512xf32, #tpu.memory_space<vmem>>, vector<1x512xf32>
    %c15_i32 = arith.constant 15 : i32
    %37 = tpu.dynamic_rotate %23 by %c15_i32 dim 1 : vector<8x512xf32>, i32 -> vector<8x512xf32>
    %38 = vector.broadcast %36 : vector<1x512xf32> to vector<8x512xf32>
    %39 = arith.mulf %37, %38 : vector<8x512xf32>
    %40 = arith.truncf %39 : vector<8x512xf32> to vector<8x512xbf16>
    %c16 = arith.constant 16 : index
    %c0_25 = arith.constant 0 : index
    %41 = vector.load %arg11[%c16, %c0_25] : memref<72x512xbf16, #tpu.memory_space<vmem>>, vector<8x512xbf16>
    tpu.vector_store %arg11[%c16, %c0_25], %40 {strides = array<i32>} : memref<72x512xbf16, #tpu.memory_space<vmem>>, vector<8x512xbf16>,
    %c3 = arith.constant 3 : index
    %c0_26 = arith.constant 0 : index
    %42 = vector.load %arg9[%c3, %c0_26] : memref<9x512xf32, #tpu.memory_space<vmem>>, vector<1x512xf32>
    %c1_i32 = arith.constant 1 : i32
    %43 = tpu.dynamic_rotate %23 by %c1_i32 dim 1 : vector<8x512xf32>, i32 -> vector<8x512xf32>
    %44 = vector.broadcast %42 : vector<1x512xf32> to vector<8x512xf32>
    %45 = arith.mulf %43, %44 : vector<8x512xf32>
    %46 = arith.truncf %45 : vector<8x512xf32> to vector<8x512xbf16>
    %c24 = arith.constant 24 : index
    %c0_27 = arith.constant 0 : index
    %47 = vector.load %arg11[%c24, %c0_27] : memref<72x512xbf16, #tpu.memory_space<vmem>>, vector<8x512xbf16>
    tpu.vector_store %arg11[%c24, %c0_27], %46 {strides = array<i32>} : memref<72x512xbf16, #tpu.memory_space<vmem>>, vector<8x512xbf16>,
    %48 = arith.truncf %23 : vector<8x512xf32> to vector<8x512xbf16>
    %c32 = arith.constant 32 : index
    %c0_28 = arith.constant 0 : index
    %49 = vector.load %arg11[%c32, %c0_28] : memref<72x512xbf16, #tpu.memory_space<vmem>>, vector<8x512xbf16>
    tpu.vector_store %arg11[%c32, %c0_28], %48 {strides = array<i32>} : memref<72x512xbf16, #tpu.memory_space<vmem>>, vector<8x512xbf16>,
    %c5 = arith.constant 5 : index
    %c0_29 = arith.constant 0 : index
    %50 = vector.load %arg9[%c5, %c0_29] : memref<9x512xf32, #tpu.memory_space<vmem>>, vector<1x512xf32>
    %c511_i32 = arith.constant 511 : i32
    %51 = tpu.dynamic_rotate %23 by %c511_i32 dim 1 : vector<8x512xf32>, i32 -> vector<8x512xf32>
    %52 = vector.broadcast %50 : vector<1x512xf32> to vector<8x512xf32>
    %53 = arith.mulf %51, %52 : vector<8x512xf32>
    %54 = arith.truncf %53 : vector<8x512xf32> to vector<8x512xbf16>
    %c40 = arith.constant 40 : index
    %c0_30 = arith.constant 0 : index
    %55 = vector.load %arg11[%c40, %c0_30] : memref<72x512xbf16, #tpu.memory_space<vmem>>, vector<8x512xbf16>
    tpu.vector_store %arg11[%c40, %c0_30], %54 {strides = array<i32>} : memref<72x512xbf16, #tpu.memory_space<vmem>>, vector<8x512xbf16>,
    %c6 = arith.constant 6 : index
    %c0_31 = arith.constant 0 : index
    %56 = vector.load %arg9[%c6, %c0_31] : memref<9x512xf32, #tpu.memory_space<vmem>>, vector<1x512xf32>
    %c497_i32 = arith.constant 497 : i32
    %57 = tpu.dynamic_rotate %23 by %c497_i32 dim 1 : vector<8x512xf32>, i32 -> vector<8x512xf32>
    %58 = vector.broadcast %56 : vector<1x512xf32> to vector<8x512xf32>
    %59 = arith.mulf %57, %58 : vector<8x512xf32>
    %60 = arith.truncf %59 : vector<8x512xf32> to vector<8x512xbf16>
    %c48 = arith.constant 48 : index
    %c0_32 = arith.constant 0 : index
    %61 = vector.load %arg11[%c48, %c0_32] : memref<72x512xbf16, #tpu.memory_space<vmem>>, vector<8x512xbf16>
    tpu.vector_store %arg11[%c48, %c0_32], %60 {strides = array<i32>} : memref<72x512xbf16, #tpu.memory_space<vmem>>, vector<8x512xbf16>,
    %c7 = arith.constant 7 : index
    %c0_33 = arith.constant 0 : index
    %62 = vector.load %arg9[%c7, %c0_33] : memref<9x512xf32, #tpu.memory_space<vmem>>, vector<1x512xf32>
    %c496_i32 = arith.constant 496 : i32
    %63 = tpu.dynamic_rotate %23 by %c496_i32 dim 1 : vector<8x512xf32>, i32 -> vector<8x512xf32>
    %64 = vector.broadcast %62 : vector<1x512xf32> to vector<8x512xf32>
    %65 = arith.mulf %63, %64 : vector<8x512xf32>
    %66 = arith.truncf %65 : vector<8x512xf32> to vector<8x512xbf16>
    %c56 = arith.constant 56 : index
    %c0_34 = arith.constant 0 : index
    %67 = vector.load %arg11[%c56, %c0_34] : memref<72x512xbf16, #tpu.memory_space<vmem>>, vector<8x512xbf16>
    tpu.vector_store %arg11[%c56, %c0_34], %66 {strides = array<i32>} : memref<72x512xbf16, #tpu.memory_space<vmem>>, vector<8x512xbf16>,
    %c8_35 = arith.constant 8 : index
    %c0_36 = arith.constant 0 : index
    %68 = vector.load %arg9[%c8_35, %c0_36] : memref<9x512xf32, #tpu.memory_space<vmem>>, vector<1x512xf32>
    %c495_i32 = arith.constant 495 : i32
    %69 = tpu.dynamic_rotate %23 by %c495_i32 dim 1 : vector<8x512xf32>, i32 -> vector<8x512xf32>
    %70 = vector.broadcast %68 : vector<1x512xf32> to vector<8x512xf32>
    %71 = arith.mulf %69, %70 : vector<8x512xf32>
    %72 = arith.truncf %71 : vector<8x512xf32> to vector<8x512xbf16>
    %c64 = arith.constant 64 : index
    %c0_37 = arith.constant 0 : index
    %73 = vector.load %arg11[%c64, %c0_37] : memref<72x512xbf16, #tpu.memory_space<vmem>>, vector<8x512xbf16>
    tpu.vector_store %arg11[%c64, %c0_37], %72 {strides = array<i32>} : memref<72x512xbf16, #tpu.memory_space<vmem>>, vector<8x512xbf16>,
    %c0_38 = arith.constant 0 : index
    %c0_39 = arith.constant 0 : index
    %74 = vector.load %arg8[%c0_38, %c0_39] : memref<8x72xbf16, #tpu.memory_space<vmem>>, vector<8x72xbf16>
    %c0_40 = arith.constant 0 : index
    %c0_41 = arith.constant 0 : index
    %75 = vector.load %arg11[%c0_40, %c0_41] : memref<72x512xbf16, #tpu.memory_space<vmem>>, vector<72x512xbf16>
    %cst_42 = arith.constant dense<0.000000e+00> : vector<8x512xf32>
    %76 = tpu.matmul %74, %75, %cst_42 {dimension_numbers = #tpu.dot_dimension_numbers<[1], [0], [0], [1], [0, 0, 1, 1], [], []>} : vector<8x72xbf16>, vector<72x512xbf16>, vector<8x512xf32> -> vector<8x512xf32>
    %c0_43 = arith.constant 0 : index
    %c0_44 = arith.constant 0 : index
    %77 = vector.load %arg10[%c0_43, %c0_44] : memref<8x512xf32, #tpu.memory_space<vmem>>, vector<8x512xf32>
    tpu.vector_store %arg10[%c0_43, %c0_44], %76 {strides = array<i32>} : memref<8x512xf32, #tpu.memory_space<vmem>>, vector<8x512xf32>,
    return
  }
}

</mosaic_0001>

<llo_original>
// kernel: tpu_custom_call.1
$region0: #{tpu_custom_call.1}
  #allocation0 [shape = 'u32[]', space=smem, size = 0x4, offset = 0x4, fixed_abs, tag = 'smem constant byte address 0x4 - core index']
  #allocation1 [shape = 'u32[144,128]{1,0:T(1,128)}', space=vmem, size = 0x12000, scoped, tag = 'internal scratch']
  #allocation2 [shape = 'bf16[72,512]{1,0:T(8,128)(2,1)}', space=vmem, size = 0x12000, scoped, tag = 'scratch operand']
  %s0 = inlined_call_operand.vmem [shape: bf16[8,128], index: 0, kind: input, shape index: {}]
  %s1 = inlined_call_operand.hbm [shape: f32[16,512], index: 1, kind: input, shape index: {}]
  %s2 = inlined_call_operand.hbm [shape: bf16[128,512], index: 2, kind: input, shape index: {}]
  %s3 = inlined_call_operand.vmem [shape: f32[16,1], index: 3, kind: input, shape index: {}]
  %s4 = inlined_call_operand.vmem [shape: f32[16,1], index: 4, kind: input, shape index: {}]
  %s5 = inlined_call_operand.vmem [shape: bf16[8,16], index: 5, kind: input, shape index: {}]
  %s6 = inlined_call_operand.vmem [shape: f32[8,1], index: 6, kind: input, shape index: {}]
  %s7 = inlined_call_operand.vmem [shape: f32[8,1], index: 7, kind: input, shape index: {}]
  %s8 = inlined_call_operand.vmem [shape: bf16[8,72], index: 8, kind: input, shape index: {}]
  %s9 = inlined_call_operand.vmem [shape: f32[9,512], index: 9, kind: input, shape index: {}]
  %s10 = inlined_call_operand.hbm [shape: f32[8,512], index: 10, kind: output, shape index: {}]
  %s11 = sld [smem:[#allocation0]]
  $region58: #{tpu_custom_call.1} parent=0
    _
  %s13 = ssub.s32 1, %s11
  %s14 = scalar_select 0, %s13, %s11
  $region1: #{tpu_custom_call.1} parent=0
    #allocation3 [shape = 'u8[32768]{0}', space=vmem, size = 0x8000, scoped, tag = 'input window, operand 1, single buffered']
    #allocation4 [shape = 's32[1]{0}', space=sflag, size = 0x4, scoped, tag = 'scoped memory for tpu_custom_call.1']
    #allocation5 [shape = 's32[1]{0}', space=sflag, size = 0x4, scoped, tag = 'scoped memory for tpu_custom_call.1']
    #allocation6 [shape = 'u8[131072]{0}', space=vmem, size = 0x20000, scoped, tag = 'input window, operand 2, single buffered']
    #allocation7 [shape = 's32[1]{0}', space=sflag, size = 0x4, scoped, tag = 'scoped memory for tpu_custom_call.1']
    #allocation8 [shape = 'u8[16384]{0}', space=vmem, size = 0x4000, scoped, tag = 'output window, operand 0, single buffered']
    %15 = vsyncpa [#allocation4], 0
    %16 = vsyncpa [#allocation7], 0
    %17 = vsyncpa [#allocation5], 0
    // Predicated region
    $region2: #{tpu_custom_call.1} parent=1 // pred_check
      _
    $region3: #{tpu_custom_call.1} parent=1 // pred_check_branch
      %19 = sbr.rel (0) target = $region5
    $region4: #{tpu_custom_call.1} parent=1 // pred_region
      _
    $region5: #{tpu_custom_call.1} parent=1 // pred_fallthru
      _
    // Predicated region
    $region6: #{tpu_custom_call.1} parent=1 // pred_check
      _
    $region7: #{tpu_custom_call.1} parent=1 // pred_check_branch
      %21 = sbr.rel (0) target = $region9
    $region8: #{tpu_custom_call.1} parent=1 // pred_region
      %s23 = ssub.s32 1024, 1024
      %24 = vsyncadd [#allocation4], %s23
      %s25 = sshll.u32 [#allocation3], 4
      %s26 = int_to_ptr.vmem [resolvable:$true] %s25
      %31 = dma.hbm_to_vmem [thread:$0]  %s1, 1024, %s26, [#allocation4], 512, 512, 32
    $region9: #{tpu_custom_call.1} parent=1 // pred_fallthru
      _
    // Predicated region
    $region10: #{tpu_custom_call.1} parent=1 // pred_check
      _
    $region11: #{tpu_custom_call.1} parent=1 // pred_check_branch
      %33 = sbr.rel (0) target = $region13
    $region12: #{tpu_custom_call.1} parent=1 // pred_region
      %s35 = ssub.s32 4096, 4096
      %36 = vsyncadd [#allocation7], %s35
      %s37 = sshll.u32 [#allocation6], 4
      %s38 = int_to_ptr.vmem [resolvable:$true] %s37
      %43 = dma.hbm_to_vmem [thread:$0]  %s2, 4096, %s38, [#allocation7], 256, 256, 16
    $region13: #{tpu_custom_call.1} parent=1 // pred_fallthru
      _
    // Predicated region
    $region14: #{tpu_custom_call.1} parent=1 // pred_check
      _
    $region15: #{tpu_custom_call.1} parent=1 // pred_check_branch
      %45 = sbr.rel (0) target = $region17
    $region16: #{tpu_custom_call.1} parent=1 // pred_region
      _
    $region17: #{tpu_custom_call.1} parent=1 // pred_fallthru
      _
    // Predicated region
    $region18: #{tpu_custom_call.1} parent=1 // pred_check
      _
    $region19: #{tpu_custom_call.1} parent=1 // pred_check_branch
      %47 = sbr.rel (0) target = $region21
    $region20: #{tpu_custom_call.1} parent=1 // pred_region
      _
    $region21: #{tpu_custom_call.1} parent=1 // pred_fallthru
      _
    // Predicated region
    $region22: #{tpu_custom_call.1} parent=1 // pred_check
      _
    $region23: #{tpu_custom_call.1} parent=1 // pred_check_branch
      %49 = sbr.rel (0) target = $region25
    $region24: #{tpu_custom_call.1} parent=1 // pred_region
      _
    $region25: #{tpu_custom_call.1} parent=1 // pred_fallthru
      _
    // Predicated region
    $region26: #{tpu_custom_call.1} parent=1 // pred_check
      _
    $region27: #{tpu_custom_call.1} parent=1 // pred_check_branch
      %51 = sbr.rel (0) target = $region29
    $region28: #{tpu_custom_call.1} parent=1 // pred_region
      _
    $region29: #{tpu_custom_call.1} parent=1 // pred_fallthru
      _
    // Predicated region
    $region30: #{tpu_custom_call.1} parent=1 // pred_check
      _
    $region31: #{tpu_custom_call.1} parent=1 // pred_check_branch
      %53 = sbr.rel (0) target = $region33
    $region32: #{tpu_custom_call.1} parent=1 // pred_region
      _
    $region33: #{tpu_custom_call.1} parent=1 // pred_fallthru
      _
    // Predicated region
    $region34: #{tpu_custom_call.1} parent=1 // pred_check
      _
    $region35: #{tpu_custom_call.1} parent=1 // pred_check_branch
      %55 = sbr.rel (0) target = $region37
    $region36: #{tpu_custom_call.1} parent=1 // pred_region
      _
    $region37: #{tpu_custom_call.1} parent=1 // pred_fallthru
      _
    // Predicated region
    $region38: #{tpu_custom_call.1} parent=1 // pred_check
      _
    $region39: #{tpu_custom_call.1} parent=1 // pred_check_branch
      %57 = sbr.rel (0) target = $region41
    $region40: #{tpu_custom_call.1} parent=1 // pred_region
      _
    $region41: #{tpu_custom_call.1} parent=1 // pred_fallthru
      _
    // Predicated region
    $region42: #{tpu_custom_call.1} parent=1 // pred_check
      _
    $region43: #{tpu_custom_call.1} parent=1 // pred_check_branch
      %59 = sbr.rel (0) target = $region45
    $region44: #{tpu_custom_call.1} parent=1 // pred_region
      %60 = dma.done [#allocation4], 1024
    $region45: #{tpu_custom_call.1} parent=1 // pred_fallthru
      _
    // Predicated region
    $region46: #{tpu_custom_call.1} parent=1 // pred_check
      _
    $region47: #{tpu_custom_call.1} parent=1 // pred_check_branch
      %62 = sbr.rel (0) target = $region49
    $region48: #{tpu_custom_call.1} parent=1 // pred_region
      %63 = dma.done [#allocation7], 4096
    $region49: #{tpu_custom_call.1} parent=1 // pred_fallthru
      _
    %v65 = vld [vmem:[%s0] sm:$0xf]
    %v66 = vld [vmem:[#allocation6] sm:$0xff]
    %v67 = vld [vmem:[#allocation6 + $0x8] sm:$0xff]
    %v68 = vld [vmem:[#allocation6 + $0x10] sm:$0xff]
    %v69 = vld [vmem:[#allocation6 + $0x18] sm:$0xff]
    %v70 = vld [vmem:[#allocation6 + $0x20] sm:$0xff]
    %v71 = vld [vmem:[#allocation6 + $0x28] sm:$0xff]
    %v72 = vld [vmem:[#allocation6 + $0x30] sm:$0xff]
    %v73 = vld [vmem:[#allocation6 + $0x38] sm:$0xff]
    %v74 = vld [vmem:[#allocation6 + $0x40] sm:$0xff]
    %v75 = vld [vmem:[#allocation6 + $0x48] sm:$0xff]
    %v76 = vld [vmem:[#allocation6 + $0x50] sm:$0xff]
    %v77 = vld [vmem:[#allocation6 + $0x58] sm:$0xff]
    %v78 = vld [vmem:[#allocation6 + $0x60] sm:$0xff]
    %v79 = vld [vmem:[#allocation6 + $0x68] sm:$0xff]
    %v80 = vld [vmem:[#allocation6 + $0x70] sm:$0xff]
    %v81 = vld [vmem:[#allocation6 + $0x78] sm:$0xff]
    %v82 = vld [vmem:[#allocation6 + $0x80] sm:$0xff]
    %v83 = vld [vmem:[#allocation6 + $0x88] sm:$0xff]
    %v84 = vld [vmem:[#allocation6 + $0x90] sm:$0xff]
    %v85 = vld [vmem:[#allocation6 + $0x98] sm:$0xff]
    %v86 = vld [vmem:[#allocation6 + $0xa0] sm:$0xff]
    %v87 = vld [vmem:[#allocation6 + $0xa8] sm:$0xff]
    %v88 = vld [vmem:[#allocation6 + $0xb0] sm:$0xff]
    %v89 = vld [vmem:[#allocation6 + $0xb8] sm:$0xff]
    %v90 = vld [vmem:[#allocation6 + $0xc0] sm:$0xff]
    %v91 = vld [vmem:[#allocation6 + $0xc8] sm:$0xff]
    %v92 = vld [vmem:[#allocation6 + $0xd0] sm:$0xff]
    %v93 = vld [vmem:[#allocation6 + $0xd8] sm:$0xff]
    %v94 = vld [vmem:[#allocation6 + $0xe0] sm:$0xff]
    %v95 = vld [vmem:[#allocation6 + $0xe8] sm:$0xff]
    %v96 = vld [vmem:[#allocation6 + $0xf0] sm:$0xff]
    %v97 = vld [vmem:[#allocation6 + $0xf8] sm:$0xff]
    %v98 = vld [vmem:[#allocation3] sm:$0xff]
    %v99 = vld [vmem:[#allocation3 + $0x8] sm:$0xff]
    %v100 = vld [vmem:[#allocation3 + $0x10] sm:$0xff]
    %v101 = vld [vmem:[#allocation3 + $0x18] sm:$0xff]
    %v102 = vld [vmem:[#allocation3 + $0x20] sm:$0xff]
    %v103 = vld [vmem:[#allocation3 + $0x28] sm:$0xff]
    %v104 = vld [vmem:[#allocation3 + $0x30] sm:$0xff]
    %v105 = vld [vmem:[#allocation3 + $0x38] sm:$0xff]
    %v106 = vld [vmem:[%s3] sm:$0xff]
    %v107 = vld [vmem:[%s3 + $0x8] sm:$0xff]
    %109 = vset.pattern.permute.xlu0 0
    %110 = vperm.xlu0 %109, %v106
    %v111 = vpop.permute.xlu0 %110
    %114 = vset.pattern.permute.xlu0 0
    %115 = vperm.xlu0 %114, %v107
    %v116 = vpop.permute.xlu0 %115
    %v118 = vmul.f32 %v98, %v111
    %v119 = vmul.f32 %v99, %v111
    %v120 = vmul.f32 %v100, %v111
    %v121 = vmul.f32 %v101, %v111
    %v122 = vmul.f32 %v102, %v116
    %v123 = vmul.f32 %v103, %v116
    %v124 = vmul.f32 %v104, %v116
    %v125 = vmul.f32 %v105, %v116
    %v126 = vld [vmem:[%s4] sm:$0xff]
    %v127 = vld [vmem:[%s4 + $0x8] sm:$0xff]
    %129 = vset.pattern.permute.xlu0 0
    %130 = vperm.xlu0 %129, %v126
    %v131 = vpop.permute.xlu0 %130
    %134 = vset.pattern.permute.xlu0 0
    %135 = vperm.xlu0 %134, %v127
    %v136 = vpop.permute.xlu0 %135
    %v138 = vadd.f32 %v118, %v131
    %v139 = vadd.f32 %v119, %v131
    %v140 = vadd.f32 %v120, %v131
    %v141 = vadd.f32 %v121, %v131
    %v142 = vadd.f32 %v122, %v136
    %v143 = vadd.f32 %v123, %v136
    %v144 = vadd.f32 %v124, %v136
    %v145 = vadd.f32 %v125, %v136
    %v146 = vmax.f32 %v138, 0.0
    %v147 = vmax.f32 %v139, 0.0
    %v148 = vmax.f32 %v140, 0.0
    %v149 = vmax.f32 %v141, 0.0
    %v150 = vmax.f32 %v142, 0.0
    %v151 = vmax.f32 %v143, 0.0
    %v152 = vmax.f32 %v144, 0.0
    %v153 = vmax.f32 %v145, 0.0
    %v154 = vld [vmem:[%s5] sm:$0xf]
    %v155 = vpack.c.bf16 %v150, %v146
    %v156 = vpack.c.bf16 %v151, %v147
    %v157 = vpack.c.bf16 %v152, %v148
    %v158 = vpack.c.bf16 %v153, %v149
    %vm159 = vcmask 130048
    %v161 = vsel %vm159, %v154, 0
    %163 = vmatprep.subr.bf16.mxu0 %v156
    %164 = vmatpush1.bf16.msra.mxu0 %v155
    %165 = vmatprep.subr.bf16.mxu0 0
    %166 = vmatpush1.bf16.msra.mxu0 0
    %167 = vmatprep.subr.bf16.mxu0 0
    %168 = vmatpush1.bf16.msra.mxu0 0
    %169 = vmatprep.subr.bf16.mxu0 0
    %170 = vmatpush1.bf16.msra.mxu0 0
    %171 = vmatprep.subr.bf16.mxu0 0
    %172 = vmatpush1.bf16.msra.mxu0 0
    %173 = vmatprep.subr.bf16.mxu0 0
    %174 = vmatpush1.bf16.msra.mxu0 0
    %175 = vmatprep.subr.bf16.mxu0 0
    %176 = vmatpush1.bf16.msra.mxu0 0
    %177 = vmatprep.subr.bf16.mxu0 0
    %178 = vmatpush1.bf16.msra.mxu0 0
    %179 = vmatprep.subr.bf16.mxu0 0
    %180 = vmatpush1.bf16.msra.mxu0 0
    %181 = vmatprep.subr.bf16.mxu0 0
    %182 = vmatpush1.bf16.msra.mxu0 0
    %183 = vmatprep.subr.bf16.mxu0 0
    %184 = vmatpush1.bf16.msra.mxu0 0
    %185 = vmatprep.subr.bf16.mxu0 0
    %186 = vmatpush1.bf16.msra.mxu0 0
    %187 = vmatprep.subr.bf16.mxu0 0
    %188 = vmatpush1.bf16.msra.mxu0 0
    %189 = vmatprep.subr.bf16.mxu0 0
    %190 = vmatpush1.bf16.msra.mxu0 0
    %191 = vmatprep.subr.bf16.mxu0 0
    %192 = vmatpush1.bf16.msra.mxu0 0
    %193 = vmatprep.subr.bf16.mxu0 0
    %194 = vmatpush1.bf16.msra.mxu0 0
    %195 = vmatprep.mubr.bf16.mxu0 0
    %196 = vmatmul.mubr.bf16.gmra.mrb[0].mxu0 %v161
    %v197 = vpop.f32.mrb[0].mxu0
    %v198 = vadd.f32 0.0, %v197
    %v199 = vpop.f32.mrb[0].mxu0
    %v200 = vadd.f32 0.0, %v199
    %v201 = vpop.f32.mrb[0].mxu0
    %v202 = vpop.f32.mrb[0].mxu0
    %203 = vdwg.mxu0
    %204 = vmatprep.subr.bf16.mxu0 %v158
    %205 = vmatpush1.bf16.msra.mxu0 %v157
    %206 = vmatprep.subr.bf16.mxu0 0
    %207 = vmatpush1.bf16.msra.mxu0 0
    %208 = vmatprep.subr.bf16.mxu0 0
    %209 = vmatpush1.bf16.msra.mxu0 0
    %210 = vmatprep.subr.bf16.mxu0 0
    %211 = vmatpush1.bf16.msra.mxu0 0
    %212 = vmatprep.subr.bf16.mxu0 0
    %213 = vmatpush1.bf16.msra.mxu0 0
    %214 = vmatprep.subr.bf16.mxu0 0
    %215 = vmatpush1.bf16.msra.mxu0 0
    %216 = vmatprep.subr.bf16.mxu0 0
    %217 = vmatpush1.bf16.msra.mxu0 0
    %218 = vmatprep.subr.bf16.mxu0 0
    %219 = vmatpush1.bf16.msra.mxu0 0
    %220 = vmatprep.subr.bf16.mxu0 0
    %221 = vmatpush1.bf16.msra.mxu0 0
    %222 = vmatprep.subr.bf16.mxu0 0
    %223 = vmatpush1.bf16.msra.mxu0 0
    %224 = vmatprep.subr.bf16.mxu0 0
    %225 = vmatpush1.bf16.msra.mxu0 0
    %226 = vmatprep.subr.bf16.mxu0 0
    %227 = vmatpush1.bf16.msra.mxu0 0
    %228 = vmatprep.subr.bf16.mxu0 0
    %229 = vmatpush1.bf16.msra.mxu0 0
    %230 = vmatprep.subr.bf16.mxu0 0
    %231 = vmatpush1.bf16.msra.mxu0 0
    %232 = vmatprep.subr.bf16.mxu0 0
    %233 = vmatpush1.bf16.msra.mxu0 0
    %234 = vmatprep.subr.bf16.mxu0 0
    %235 = vmatpush1.bf16.msra.mxu0 0
    %236 = vmatprep.mubr.bf16.mxu0 0
    %237 = vmatmul.mubr.bf16.gmra.mrb[0].mxu0 %v161
    %v238 = vpop.f32.mrb[0].mxu0
    %v239 = vadd.f32 0.0, %v238
    %v240 = vpop.f32.mrb[0].mxu0
    %v241 = vadd.f32 0.0, %v240
    %v242 = vpop.f32.mrb[0].mxu0
    %v243 = vpop.f32.mrb[0].mxu0
    %244 = vdwg.mxu0
    %v277 = vunpack.c.l.b16 %v66
    %v278 = vunpack.c.h.b16 %v66
    %v279 = vunpack.c.l.b16 %v67
    %v280 = vunpack.c.h.b16 %v67
    %v281 = vunpack.c.l.b16 %v68
    %v282 = vunpack.c.h.b16 %v68
    %v283 = vunpack.c.l.b16 %v69
    %v284 = vunpack.c.h.b16 %v69
    %v285 = vunpack.c.l.b16 %v70
    %v286 = vunpack.c.h.b16 %v70
    %v287 = vunpack.c.l.b16 %v71
    %v288 = vunpack.c.h.b16 %v71
    %v289 = vunpack.c.l.b16 %v72
    %v290 = vunpack.c.h.b16 %v72
    %v291 = vunpack.c.l.b16 %v73
    %v292 = vunpack.c.h.b16 %v73
    %v293 = vunpack.c.l.b16 %v74
    %v294 = vunpack.c.h.b16 %v74
    %v295 = vunpack.c.l.b16 %v75
    %v296 = vunpack.c.h.b16 %v75
    %v297 = vunpack.c.l.b16 %v76
    %v298 = vunpack.c.h.b16 %v76
    %v299 = vunpack.c.l.b16 %v77
    %v300 = vunpack.c.h.b16 %v77
    %v301 = vunpack.c.l.b16 %v78
    %v302 = vunpack.c.h.b16 %v78
    %v303 = vunpack.c.l.b16 %v79
    %v304 = vunpack.c.h.b16 %v79
    %v305 = vunpack.c.l.b16 %v80
    %v306 = vunpack.c.h.b16 %v80
    %v307 = vunpack.c.l.b16 %v81
    %v308 = vunpack.c.h.b16 %v81
    %v309 = vunpack.c.l.b16 %v82
    %v310 = vunpack.c.h.b16 %v82
    %v311 = vunpack.c.l.b16 %v83
    %v312 = vunpack.c.h.b16 %v83
    %v313 = vunpack.c.l.b16 %v84
    %v314 = vunpack.c.h.b16 %v84
    %v315 = vunpack.c.l.b16 %v85
    %v316 = vunpack.c.h.b16 %v85
    %v317 = vunpack.c.l.b16 %v86
    %v318 = vunpack.c.h.b16 %v86
    %v319 = vunpack.c.l.b16 %v87
    %v320 = vunpack.c.h.b16 %v87
    %v321 = vunpack.c.l.b16 %v88
    %v322 = vunpack.c.h.b16 %v88
    %v323 = vunpack.c.l.b16 %v89
    %v324 = vunpack.c.h.b16 %v89
    %v325 = vunpack.c.l.b16 %v90
    %v326 = vunpack.c.h.b16 %v90
    %v327 = vunpack.c.l.b16 %v91
    %v328 = vunpack.c.h.b16 %v91
    %v329 = vunpack.c.l.b16 %v92
    %v330 = vunpack.c.h.b16 %v92
    %v331 = vunpack.c.l.b16 %v93
    %v332 = vunpack.c.h.b16 %v93
    %v333 = vunpack.c.l.b16 %v94
    %v334 = vunpack.c.h.b16 %v94
    %v335 = vunpack.c.l.b16 %v95
    %v336 = vunpack.c.h.b16 %v95
    %v337 = vunpack.c.l.b16 %v96
    %v338 = vunpack.c.h.b16 %v96
    %v339 = vunpack.c.l.b16 %v97
    %v340 = vunpack.c.h.b16 %v97
    %v341 = vpack.c.b16 %v281, %v277
    %v342 = vpack.c.b16 %v282, %v278
    %v343 = vpack.c.b16 %v283, %v279
    %v344 = vpack.c.b16 %v284, %v280
    %v345 = vpack.c.b16 %v289, %v285
    %v346 = vpack.c.b16 %v290, %v286
    %v347 = vpack.c.b16 %v291, %v287
    %v348 = vpack.c.b16 %v292, %v288
    %v349 = vpack.c.b16 %v297, %v293
    %v350 = vpack.c.b16 %v298, %v294
    %v351 = vpack.c.b16 %v299, %v295
    %v352 = vpack.c.b16 %v300, %v296
    %v353 = vpack.c.b16 %v305, %v301
    %v354 = vpack.c.b16 %v306, %v302
    %v355 = vpack.c.b16 %v307, %v303
    %v356 = vpack.c.b16 %v308, %v304
    %v357 = vpack.c.b16 %v313, %v309
    %v358 = vpack.c.b16 %v314, %v310
    %v359 = vpack.c.b16 %v315, %v311
    %v360 = vpack.c.b16 %v316, %v312
    %v361 = vpack.c.b16 %v321, %v317
    %v362 = vpack.c.b16 %v322, %v318
    %v363 = vpack.c.b16 %v323, %v319
    %v364 = vpack.c.b16 %v324, %v320
    %v365 = vpack.c.b16 %v329, %v325
    %v366 = vpack.c.b16 %v330, %v326
    %v367 = vpack.c.b16 %v331, %v327
    %v368 = vpack.c.b16 %v332, %v328
    %v369 = vpack.c.b16 %v337, %v333
    %v370 = vpack.c.b16 %v338, %v334
    %v371 = vpack.c.b16 %v339, %v335
    %v372 = vpack.c.b16 %v340, %v336
    %405 = vmatprep.subr.bf16.mxu0 %v342
    %406 = vmatpush1.bf16.msra.mxu0 %v341
    %407 = vmatprep.subr.bf16.mxu0 %v346
    %408 = vmatpush1.bf16.msra.mxu0 %v345
    %409 = vmatprep.subr.bf16.mxu0 %v350
    %410 = vmatpush1.bf16.msra.mxu0 %v349
    %411 = vmatprep.subr.bf16.mxu0 %v354
    %412 = vmatpush1.bf16.msra.mxu0 %v353
    %413 = vmatprep.subr.bf16.mxu0 %v358
    %414 = vmatpush1.bf16.msra.mxu0 %v357
    %415 = vmatprep.subr.bf16.mxu0 %v362
    %416 = vmatpush1.bf16.msra.mxu0 %v361
    %417 = vmatprep.subr.bf16.mxu0 %v366
    %418 = vmatpush1.bf16.msra.mxu0 %v365
    %419 = vmatprep.subr.bf16.mxu0 %v370
    %420 = vmatpush1.bf16.msra.mxu0 %v369
    %421 = vmatprep.subr.bf16.mxu0 0
    %422 = vmatpush1.bf16.msra.mxu0 0
    %423 = vmatprep.subr.bf16.mxu0 0
    %424 = vmatpush1.bf16.msra.mxu0 0
    %425 = vmatprep.subr.bf16.mxu0 0
    %426 = vmatpush1.bf16.msra.mxu0 0
    %427 = vmatprep.subr.bf16.mxu0 0
    %428 = vmatpush1.bf16.msra.mxu0 0
    %429 = vmatprep.subr.bf16.mxu0 0
    %430 = vmatpush1.bf16.msra.mxu0 0
    %431 = vmatprep.subr.bf16.mxu0 0
    %432 = vmatpush1.bf16.msra.mxu0 0
    %433 = vmatprep.subr.bf16.mxu0 0
    %434 = vmatpush1.bf16.msra.mxu0 0
    %435 = vmatprep.subr.bf16.mxu0 0
    %436 = vmatpush1.bf16.msra.mxu0 0
    %437 = vmatprep.mubr.bf16.mxu0 0
    %438 = vmatmul.mubr.bf16.gmra.mrb[0].mxu0 %v65
    %v439 = vpop.f32.mrb[0].mxu0
    %v440 = vadd.f32 %v198, %v439
    %v441 = vpop.f32.mrb[0].mxu0
    %v442 = vadd.f32 %v200, %v441
    %v443 = vpop.f32.mrb[0].mxu0
    %v444 = vpop.f32.mrb[0].mxu0
    %445 = vdwg.mxu0
    %446 = vmatprep.subr.bf16.mxu0 %v344
    %447 = vmatpush1.bf16.msra.mxu0 %v343
    %448 = vmatprep.subr.bf16.mxu0 %v348
    %449 = vmatpush1.bf16.msra.mxu0 %v347
    %450 = vmatprep.subr.bf16.mxu0 %v352
    %451 = vmatpush1.bf16.msra.mxu0 %v351
    %452 = vmatprep.subr.bf16.mxu0 %v356
    %453 = vmatpush1.bf16.msra.mxu0 %v355
    %454 = vmatprep.subr.bf16.mxu0 %v360
    %455 = vmatpush1.bf16.msra.mxu0 %v359
    %456 = vmatprep.subr.bf16.mxu0 %v364
    %457 = vmatpush1.bf16.msra.mxu0 %v363
    %458 = vmatprep.subr.bf16.mxu0 %v368
    %459 = vmatpush1.bf16.msra.mxu0 %v367
    %460 = vmatprep.subr.bf16.mxu0 %v372
    %461 = vmatpush1.bf16.msra.mxu0 %v371
    %462 = vmatprep.subr.bf16.mxu0 0
    %463 = vmatpush1.bf16.msra.mxu0 0
    %464 = vmatprep.subr.bf16.mxu0 0
    %465 = vmatpush1.bf16.msra.mxu0 0
    %466 = vmatprep.subr.bf16.mxu0 0
    %467 = vmatpush1.bf16.msra.mxu0 0
    %468 = vmatprep.subr.bf16.mxu0 0
    %469 = vmatpush1.bf16.msra.mxu0 0
    %470 = vmatprep.subr.bf16.mxu0 0
    %471 = vmatpush1.bf16.msra.mxu0 0
    %472 = vmatprep.subr.bf16.mxu0 0
    %473 = vmatpush1.bf16.msra.mxu0 0
    %474 = vmatprep.subr.bf16.mxu0 0
    %475 = vmatpush1.bf16.msra.mxu0 0
    %476 = vmatprep.subr.bf16.mxu0 0
    %477 = vmatpush1.bf16.msra.mxu0 0
    %478 = vmatprep.mubr.bf16.mxu0 0
    %479 = vmatmul.mubr.bf16.gmra.mrb[0].mxu0 %v65
    %v480 = vpop.f32.mrb[0].mxu0
    %v481 = vadd.f32 %v239, %v480
    %v482 = vpop.f32.mrb[0].mxu0
    %v483 = vadd.f32 %v241, %v482
    %v484 = vpop.f32.mrb[0].mxu0
    %v485 = vpop.f32.mrb[0].mxu0
    %486 = vdwg.mxu0
    %v487 = vld [vmem:[%s6] sm:$0xff]
    %489 = vset.pattern.permute.xlu0 0
    %490 = vperm.xlu0 %489, %v487
    %v491 = vpop.permute.xlu0 %490
    %v493 = vmul.f32 %v440, %v491
    %v494 = vmul.f32 %v442, %v491
    %v495 = vmul.f32 %v481, %v491
    %v496 = vmul.f32 %v483, %v491
    %v497 = vld [vmem:[%s7] sm:$0xff]
    %499 = vset.pattern.permute.xlu0 0
    %500 = vperm.xlu0 %499, %v497
    %v501 = vpop.permute.xlu0 %500
    %v503 = vadd.f32 %v493, %v501
    %v504 = vadd.f32 %v494, %v501
    %v505 = vadd.f32 %v495, %v501
    %v506 = vadd.f32 %v496, %v501
    %v507 = vmax.f32 %v503, 0.0
    %v508 = vmax.f32 %v504, 0.0
    %v509 = vmax.f32 %v505, 0.0
    %v510 = vmax.f32 %v506, 0.0
    %v511 = vld [vmem:[%s9] ss:$8 sm:$0xf]
    %512 = vrot.lane.b32.xlu0 %v507, 17
    %v513 = vpop.permute.xlu0 %512
    %514 = vrot.lane.b32.xlu0 %v508, 17
    %v515 = vpop.permute.xlu0 %514
    %516 = vrot.lane.b32.xlu0 %v509, 17
    %v517 = vpop.permute.xlu0 %516
    %518 = vrot.lane.b32.xlu0 %v510, 17
    %v519 = vpop.permute.xlu0 %518
    %v520 = vlaneseq
    %v521 = vand.u32 %v520, 127
    %vm522 = vcmp.lt.s32.totalorder %v521, 17
    %v523 = vsel %vm522, %v517, %v519
    %v524 = vsel %vm522, %v515, %v517
    %v525 = vsel %vm522, %v513, %v515
    %v526 = vsel %vm522, %v519, %v513
    %v528 = vlaneseq
    %v529 = vshrl.u32 %v528, 7
    %v530 = vsub.s32 0, %v529
    %v531 = vrot.slane %v511, %v530
    %v532 = vlaneseq
    %v533 = vshrl.u32 %v532, 7
    %v534 = vsub.s32 1, %v533
    %v535 = vrot.slane %v511, %v534
    %v536 = vlaneseq
    %v537 = vshrl.u32 %v536, 7
    %v538 = vsub.s32 2, %v537
    %v539 = vrot.slane %v511, %v538
    %v540 = vlaneseq
    %v541 = vshrl.u32 %v540, 7
    %v542 = vsub.s32 3, %v541
    %v543 = vrot.slane %v511, %v542
    %v548 = vmul.f32 %v526, %v531
    %v549 = vmul.f32 %v525, %v535
    %v550 = vmul.f32 %v524, %v539
    %v551 = vmul.f32 %v523, %v543
    %v552 = vpack.c.bf16 %v548, %v548
    %v553 = vpack.c.bf16 %v549, %v549
    %v554 = vpack.c.bf16 %v550, %v550
    %v555 = vpack.c.bf16 %v551, %v551
    %v560 = vunpack.c.l.b16 %v552
    %v561 = vunpack.c.l.b16 %v553
    %v562 = vunpack.c.l.b16 %v554
    %v563 = vunpack.c.l.b16 %v555
    %v564 = vpack.c.b16 %v561, %v560
    %v565 = vpack.c.b16 %v563, %v562
    %568 = vst [vmem:[#allocation2] sm:$0xff] %v564
    %569 = vst [vmem:[#allocation2 + $0x8] sm:$0xff] %v565
    %s570 = scalar_lea.vmem %s9, 1
    %v571 = vld [vmem:[%s570] ss:$8 sm:$0xf]
    %572 = vrot.lane.b32.xlu0 %v507, 16
    %v573 = vpop.permute.xlu0 %572
    %574 = vrot.lane.b32.xlu0 %v508, 16
    %v575 = vpop.permute.xlu0 %574
    %576 = vrot.lane.b32.xlu0 %v509, 16
    %v577 = vpop.permute.xlu0 %576
    %578 = vrot.lane.b32.xlu0 %v510, 16
    %v579 = vpop.permute.xlu0 %578
    %vm580 = vcmp.lt.s32.totalorder %v521, 16
    %v581 = vsel %vm580, %v577, %v579
    %v582 = vsel %vm580, %v575, %v577
    %v583 = vsel %vm580, %v573, %v575
    %v584 = vsel %vm580, %v579, %v573
    %v586 = vlaneseq
    %v587 = vshrl.u32 %v586, 7
    %v588 = vsub.s32 0, %v587
    %v589 = vrot.slane %v571, %v588
    %v590 = vlaneseq
    %v591 = vshrl.u32 %v590, 7
    %v592 = vsub.s32 1, %v591
    %v593 = vrot.slane %v571, %v592
    %v594 = vlaneseq
    %v595 = vshrl.u32 %v594, 7
    %v596 = vsub.s32 2, %v595
    %v597 = vrot.slane %v571, %v596
    %v598 = vlaneseq
    %v599 = vshrl.u32 %v598, 7
    %v600 = vsub.s32 3, %v599
    %v601 = vrot.slane %v571, %v600
    %v606 = vmul.f32 %v584, %v589
    %v607 = vmul.f32 %v583, %v593
    %v608 = vmul.f32 %v582, %v597
    %v609 = vmul.f32 %v581, %v601
    %v610 = vpack.c.bf16 %v606, %v606
    %v611 = vpack.c.bf16 %v607, %v607
    %v612 = vpack.c.bf16 %v608, %v608
    %v613 = vpack.c.bf16 %v609, %v609
    %v618 = vunpack.c.l.b16 %v610
    %v619 = vunpack.c.l.b16 %v611
    %v620 = vunpack.c.l.b16 %v612
    %v621 = vunpack.c.l.b16 %v613
    %v622 = vpack.c.b16 %v619, %v618
    %v623 = vpack.c.b16 %v621, %v620
    %626 = vst [vmem:[#allocation2 + $0x10] sm:$0xff] %v622
    %627 = vst [vmem:[#allocation2 + $0x18] sm:$0xff] %v623
    %s628 = scalar_lea.vmem %s9, 2
    %v629 = vld [vmem:[%s628] ss:$8 sm:$0xf]
    %630 = vrot.lane.b32.xlu0 %v507, 15
    %v631 = vpop.permute.xlu0 %630
    %632 = vrot.lane.b32.xlu0 %v508, 15
    %v633 = vpop.permute.xlu0 %632
    %634 = vrot.lane.b32.xlu0 %v509, 15
    %v635 = vpop.permute.xlu0 %634
    %636 = vrot.lane.b32.xlu0 %v510, 15
    %v637 = vpop.permute.xlu0 %636
    %vm638 = vcmp.lt.s32.totalorder %v521, 15
    %v639 = vsel %vm638, %v635, %v637
    %v640 = vsel %vm638, %v633, %v635
    %v641 = vsel %vm638, %v631, %v633
    %v642 = vsel %vm638, %v637, %v631
    %v644 = vlaneseq
    %v645 = vshrl.u32 %v644, 7
    %v646 = vsub.s32 0, %v645
    %v647 = vrot.slane %v629, %v646
    %v648 = vlaneseq
    %v649 = vshrl.u32 %v648, 7
    %v650 = vsub.s32 1, %v649
    %v651 = vrot.slane %v629, %v650
    %v652 = vlaneseq
    %v653 = vshrl.u32 %v652, 7
    %v654 = vsub.s32 2, %v653
    %v655 = vrot.slane %v629, %v654
    %v656 = vlaneseq
    %v657 = vshrl.u32 %v656, 7
    %v658 = vsub.s32 3, %v657
    %v659 = vrot.slane %v629, %v658
    %v664 = vmul.f32 %v642, %v647
    %v665 = vmul.f32 %v641, %v651
    %v666 = vmul.f32 %v640, %v655
    %v667 = vmul.f32 %v639, %v659
    %v668 = vpack.c.bf16 %v664, %v664
    %v669 = vpack.c.bf16 %v665, %v665
    %v670 = vpack.c.bf16 %v666, %v666
    %v671 = vpack.c.bf16 %v667, %v667
    %v676 = vunpack.c.l.b16 %v668
    %v677 = vunpack.c.l.b16 %v669
    %v678 = vunpack.c.l.b16 %v670
    %v679 = vunpack.c.l.b16 %v671
    %v680 = vpack.c.b16 %v677, %v676
    %v681 = vpack.c.b16 %v679, %v678
    %684 = vst [vmem:[#allocation2 + $0x20] sm:$0xff] %v680
    %685 = vst [vmem:[#allocation2 + $0x28] sm:$0xff] %v681
    %s686 = scalar_lea.vmem %s9, 3
    %v687 = vld [vmem:[%s686] ss:$8 sm:$0xf]
    %688 = vrot.lane.b32.xlu0 %v507, 1
    %v689 = vpop.permute.xlu0 %688
    %690 = vrot.lane.b32.xlu0 %v508, 1
    %v691 = vpop.permute.xlu0 %690
    %692 = vrot.lane.b32.xlu0 %v509, 1
    %v693 = vpop.permute.xlu0 %692
    %694 = vrot.lane.b32.xlu0 %v510, 1
    %v695 = vpop.permute.xlu0 %694
    %vm696 = vcmp.lt.s32.totalorder %v521, 1
    %v697 = vsel %vm696, %v693, %v695
    %v698 = vsel %vm696, %v691, %v693
    %v699 = vsel %vm696, %v689, %v691
    %v700 = vsel %vm696, %v695, %v689
    %v702 = vlaneseq
    %v703 = vshrl.u32 %v702, 7
    %v704 = vsub.s32 0, %v703
    %v705 = vrot.slane %v687, %v704
    %v706 = vlaneseq
    %v707 = vshrl.u32 %v706, 7
    %v708 = vsub.s32 1, %v707
    %v709 = vrot.slane %v687, %v708
    %v710 = vlaneseq
    %v711 = vshrl.u32 %v710, 7
    %v712 = vsub.s32 2, %v711
    %v713 = vrot.slane %v687, %v712
    %v714 = vlaneseq
    %v715 = vshrl.u32 %v714, 7
    %v716 = vsub.s32 3, %v715
    %v717 = vrot.slane %v687, %v716
    %v722 = vmul.f32 %v700, %v705
    %v723 = vmul.f32 %v699, %v709
    %v724 = vmul.f32 %v698, %v713
    %v725 = vmul.f32 %v697, %v717
    %v726 = vpack.c.bf16 %v722, %v722
    %v727 = vpack.c.bf16 %v723, %v723
    %v728 = vpack.c.bf16 %v724, %v724
    %v729 = vpack.c.bf16 %v725, %v725
    %v734 = vunpack.c.l.b16 %v726
    %v735 = vunpack.c.l.b16 %v727
    %v736 = vunpack.c.l.b16 %v728
    %v737 = vunpack.c.l.b16 %v729
    %v738 = vpack.c.b16 %v735, %v734
    %v739 = vpack.c.b16 %v737, %v736
    %742 = vst [vmem:[#allocation2 + $0x30] sm:$0xff] %v738
    %743 = vst [vmem:[#allocation2 + $0x38] sm:$0xff] %v739
    %v744 = vpack.c.bf16 %v507, %v507
    %v745 = vpack.c.bf16 %v508, %v508
    %v746 = vpack.c.bf16 %v509, %v509
    %v747 = vpack.c.bf16 %v510, %v510
    %v752 = vunpack.c.l.b16 %v744
    %v753 = vunpack.c.l.b16 %v745
    %v754 = vunpack.c.l.b16 %v746
    %v755 = vunpack.c.l.b16 %v747
    %v756 = vpack.c.b16 %v753, %v752
    %v757 = vpack.c.b16 %v755, %v754
    %760 = vst [vmem:[#allocation2 + $0x40] sm:$0xff] %v756
    %761 = vst [vmem:[#allocation2 + $0x48] sm:$0xff] %v757
    %s762 = scalar_lea.vmem %s9, 5
    %v763 = vld [vmem:[%s762] ss:$8 sm:$0xf]
    %764 = vrot.lane.b32.xlu0 %v507, 127
    %v765 = vpop.permute.xlu0 %764
    %766 = vrot.lane.b32.xlu0 %v508, 127
    %v767 = vpop.permute.xlu0 %766
    %768 = vrot.lane.b32.xlu0 %v509, 127
    %v769 = vpop.permute.xlu0 %768
    %770 = vrot.lane.b32.xlu0 %v510, 127
    %v771 = vpop.permute.xlu0 %770
    %vm772 = vcmp.lt.s32.totalorder %v521, 127
    %v773 = vsel %vm772, %v769, %v771
    %v774 = vsel %vm772, %v767, %v769
    %v775 = vsel %vm772, %v765, %v767
    %v776 = vsel %vm772, %v771, %v765
    %v778 = vlaneseq
    %v779 = vshrl.u32 %v778, 7
    %v780 = vsub.s32 0, %v779
    %v781 = vrot.slane %v763, %v780
    %v782 = vlaneseq
    %v783 = vshrl.u32 %v782, 7
    %v784 = vsub.s32 1, %v783
    %v785 = vrot.slane %v763, %v784
    %v786 = vlaneseq
    %v787 = vshrl.u32 %v786, 7
    %v788 = vsub.s32 2, %v787
    %v789 = vrot.slane %v763, %v788
    %v790 = vlaneseq
    %v791 = vshrl.u32 %v790, 7
    %v792 = vsub.s32 3, %v791
    %v793 = vrot.slane %v763, %v792
    %v798 = vmul.f32 %v775, %v781
    %v799 = vmul.f32 %v774, %v785
    %v800 = vmul.f32 %v773, %v789
    %v801 = vmul.f32 %v776, %v793
    %v802 = vpack.c.bf16 %v798, %v798
    %v803 = vpack.c.bf16 %v799, %v799
    %v804 = vpack.c.bf16 %v800, %v800
    %v805 = vpack.c.bf16 %v801, %v801
    %v810 = vunpack.c.l.b16 %v802
    %v811 = vunpack.c.l.b16 %v803
    %v812 = vunpack.c.l.b16 %v804
    %v813 = vunpack.c.l.b16 %v805
    %v814 = vpack.c.b16 %v811, %v810
    %v815 = vpack.c.b16 %v813, %v812
    %818 = vst [vmem:[#allocation2 + $0x50] sm:$0xff] %v814
    %819 = vst [vmem:[#allocation2 + $0x58] sm:$0xff] %v815
    %s820 = scalar_lea.vmem %s9, 6
    %v821 = vld [vmem:[%s820] ss:$8 sm:$0xf]
    %822 = vrot.lane.b32.xlu0 %v507, 113
    %v823 = vpop.permute.xlu0 %822
    %824 = vrot.lane.b32.xlu0 %v508, 113
    %v825 = vpop.permute.xlu0 %824
    %826 = vrot.lane.b32.xlu0 %v509, 113
    %v827 = vpop.permute.xlu0 %826
    %828 = vrot.lane.b32.xlu0 %v510, 113
    %v829 = vpop.permute.xlu0 %828
    %vm830 = vcmp.lt.s32.totalorder %v521, 113
    %v831 = vsel %vm830, %v827, %v829
    %v832 = vsel %vm830, %v825, %v827
    %v833 = vsel %vm830, %v823, %v825
    %v834 = vsel %vm830, %v829, %v823
    %v836 = vlaneseq
    %v837 = vshrl.u32 %v836, 7
    %v838 = vsub.s32 0, %v837
    %v839 = vrot.slane %v821, %v838
    %v840 = vlaneseq
    %v841 = vshrl.u32 %v840, 7
    %v842 = vsub.s32 1, %v841
    %v843 = vrot.slane %v821, %v842
    %v844 = vlaneseq
    %v845 = vshrl.u32 %v844, 7
    %v846 = vsub.s32 2, %v845
    %v847 = vrot.slane %v821, %v846
    %v848 = vlaneseq
    %v849 = vshrl.u32 %v848, 7
    %v850 = vsub.s32 3, %v849
    %v851 = vrot.slane %v821, %v850
    %v856 = vmul.f32 %v833, %v839
    %v857 = vmul.f32 %v832, %v843
    %v858 = vmul.f32 %v831, %v847
    %v859 = vmul.f32 %v834, %v851
    %v860 = vpack.c.bf16 %v856, %v856
    %v861 = vpack.c.bf16 %v857, %v857
    %v862 = vpack.c.bf16 %v858, %v858
    %v863 = vpack.c.bf16 %v859, %v859
    %v868 = vunpack.c.l.b16 %v860
    %v869 = vunpack.c.l.b16 %v861
    %v870 = vunpack.c.l.b16 %v862
    %v871 = vunpack.c.l.b16 %v863
    %v872 = vpack.c.b16 %v869, %v868
    %v873 = vpack.c.b16 %v871, %v870
    %876 = vst [vmem:[#allocation2 + $0x60] sm:$0xff] %v872
    %877 = vst [vmem:[#allocation2 + $0x68] sm:$0xff] %v873
    %s878 = scalar_lea.vmem %s9, 7
    %v879 = vld [vmem:[%s878] ss:$8 sm:$0xf]
    %880 = vrot.lane.b32.xlu0 %v507, 112
    %v881 = vpop.permute.xlu0 %880
    %882 = vrot.lane.b32.xlu0 %v508, 112
    %v883 = vpop.permute.xlu0 %882
    %884 = vrot.lane.b32.xlu0 %v509, 112
    %v885 = vpop.permute.xlu0 %884
    %886 = vrot.lane.b32.xlu0 %v510, 112
    %v887 = vpop.permute.xlu0 %886
    %vm888 = vcmp.lt.s32.totalorder %v521, 112
    %v889 = vsel %vm888, %v885, %v887
    %v890 = vsel %vm888, %v883, %v885
    %v891 = vsel %vm888, %v881, %v883
    %v892 = vsel %vm888, %v887, %v881
    %v894 = vlaneseq
    %v895 = vshrl.u32 %v894, 7
    %v896 = vsub.s32 0, %v895
    %v897 = vrot.slane %v879, %v896
    %v898 = vlaneseq
    %v899 = vshrl.u32 %v898, 7
    %v900 = vsub.s32 1, %v899
    %v901 = vrot.slane %v879, %v900
    %v902 = vlaneseq
    %v903 = vshrl.u32 %v902, 7
    %v904 = vsub.s32 2, %v903
    %v905 = vrot.slane %v879, %v904
    %v906 = vlaneseq
    %v907 = vshrl.u32 %v906, 7
    %v908 = vsub.s32 3, %v907
    %v909 = vrot.slane %v879, %v908
    %v914 = vmul.f32 %v891, %v897
    %v915 = vmul.f32 %v890, %v901
    %v916 = vmul.f32 %v889, %v905
    %v917 = vmul.f32 %v892, %v909
    %v918 = vpack.c.bf16 %v914, %v914
    %v919 = vpack.c.bf16 %v915, %v915
    %v920 = vpack.c.bf16 %v916, %v916
    %v921 = vpack.c.bf16 %v917, %v917
    %v926 = vunpack.c.l.b16 %v918
    %v927 = vunpack.c.l.b16 %v919
    %v928 = vunpack.c.l.b16 %v920
    %v929 = vunpack.c.l.b16 %v921
    %v930 = vpack.c.b16 %v927, %v926
    %v931 = vpack.c.b16 %v929, %v928
    %934 = vst [vmem:[#allocation2 + $0x70] sm:$0xff] %v930
    %935 = vst [vmem:[#allocation2 + $0x78] sm:$0xff] %v931
    %s936 = scalar_lea.vmem %s9, 32
    %v937 = vld [vmem:[%s936] ss:$8 sm:$0xf]
    %938 = vrot.lane.b32.xlu0 %v507, 111
    %v939 = vpop.permute.xlu0 %938
    %940 = vrot.lane.b32.xlu0 %v508, 111
    %v941 = vpop.permute.xlu0 %940
    %942 = vrot.lane.b32.xlu0 %v509, 111
    %v943 = vpop.permute.xlu0 %942
    %944 = vrot.lane.b32.xlu0 %v510, 111
    %v945 = vpop.permute.xlu0 %944
    %vm946 = vcmp.lt.s32.totalorder %v521, 111
    %v947 = vsel %vm946, %v943, %v945
    %v948 = vsel %vm946, %v941, %v943
    %v949 = vsel %vm946, %v939, %v941
    %v950 = vsel %vm946, %v945, %v939
    %v952 = vlaneseq
    %v953 = vshrl.u32 %v952, 7
    %v954 = vsub.s32 0, %v953
    %v955 = vrot.slane %v937, %v954
    %v956 = vlaneseq
    %v957 = vshrl.u32 %v956, 7
    %v958 = vsub.s32 1, %v957
    %v959 = vrot.slane %v937, %v958
    %v960 = vlaneseq
    %v961 = vshrl.u32 %v960, 7
    %v962 = vsub.s32 2, %v961
    %v963 = vrot.slane %v937, %v962
    %v964 = vlaneseq
    %v965 = vshrl.u32 %v964, 7
    %v966 = vsub.s32 3, %v965
    %v967 = vrot.slane %v937, %v966
    %v972 = vmul.f32 %v949, %v955
    %v973 = vmul.f32 %v948, %v959
    %v974 = vmul.f32 %v947, %v963
    %v975 = vmul.f32 %v950, %v967
    %v976 = vpack.c.bf16 %v972, %v972
    %v977 = vpack.c.bf16 %v973, %v973
    %v978 = vpack.c.bf16 %v974, %v974
    %v979 = vpack.c.bf16 %v975, %v975
    %v984 = vunpack.c.l.b16 %v976
    %v985 = vunpack.c.l.b16 %v977
    %v986 = vunpack.c.l.b16 %v978
    %v987 = vunpack.c.l.b16 %v979
    %v988 = vpack.c.b16 %v985, %v984
    %v989 = vpack.c.b16 %v987, %v986
    %992 = vst [vmem:[#allocation2 + $0x80] sm:$0xff] %v988
    %993 = vst [vmem:[#allocation2 + $0x88] sm:$0xff] %v989
    %v994 = vld [vmem:[%s8] sm:$0xf]
    %v995 = vld [vmem:[#allocation2] sm:$0xff]
    %v996 = vld [vmem:[#allocation2 + $0x8] sm:$0xff]
    %v997 = vld [vmem:[#allocation2 + $0x10] sm:$0xff]
    %v998 = vld [vmem:[#allocation2 + $0x18] sm:$0xff]
    %v999 = vld [vmem:[#allocation2 + $0x20] sm:$0xff]
    %v1000 = vld [vmem:[#allocation2 + $0x28] sm:$0xff]
    %v1001 = vld [vmem:[#allocation2 + $0x30] sm:$0xff]
    %v1002 = vld [vmem:[#allocation2 + $0x38] sm:$0xff]
    %v1003 = vld [vmem:[#allocation2 + $0x40] sm:$0xff]
    %v1004 = vld [vmem:[#allocation2 + $0x48] sm:$0xff]
    %v1005 = vld [vmem:[#allocation2 + $0x50] sm:$0xff]
    %v1006 = vld [vmem:[#allocation2 + $0x58] sm:$0xff]
    %v1007 = vld [vmem:[#allocation2 + $0x60] sm:$0xff]
    %v1008 = vld [vmem:[#allocation2 + $0x68] sm:$0xff]
    %v1009 = vld [vmem:[#allocation2 + $0x70] sm:$0xff]
    %v1010 = vld [vmem:[#allocation2 + $0x78] sm:$0xff]
    %v1011 = vld [vmem:[#allocation2 + $0x80] sm:$0xff]
    %v1012 = vld [vmem:[#allocation2 + $0x88] sm:$0xff]
    %v1031 = vunpack.c.l.b16 %v995
    %v1032 = vunpack.c.h.b16 %v995
    %v1033 = vunpack.c.l.b16 %v996
    %v1034 = vunpack.c.h.b16 %v996
    %v1035 = vunpack.c.l.b16 %v997
    %v1036 = vunpack.c.h.b16 %v997
    %v1037 = vunpack.c.l.b16 %v998
    %v1038 = vunpack.c.h.b16 %v998
    %v1039 = vunpack.c.l.b16 %v999
    %v1040 = vunpack.c.h.b16 %v999
    %v1041 = vunpack.c.l.b16 %v1000
    %v1042 = vunpack.c.h.b16 %v1000
    %v1043 = vunpack.c.l.b16 %v1001
    %v1044 = vunpack.c.h.b16 %v1001
    %v1045 = vunpack.c.l.b16 %v1002
    %v1046 = vunpack.c.h.b16 %v1002
    %v1047 = vunpack.c.l.b16 %v1003
    %v1048 = vunpack.c.h.b16 %v1003
    %v1049 = vunpack.c.l.b16 %v1004
    %v1050 = vunpack.c.h.b16 %v1004
    %v1051 = vunpack.c.l.b16 %v1005
    %v1052 = vunpack.c.h.b16 %v1005
    %v1053 = vunpack.c.l.b16 %v1006
    %v1054 = vunpack.c.h.b16 %v1006
    %v1055 = vunpack.c.l.b16 %v1007
    %v1056 = vunpack.c.h.b16 %v1007
    %v1057 = vunpack.c.l.b16 %v1008
    %v1058 = vunpack.c.h.b16 %v1008
    %v1059 = vunpack.c.l.b16 %v1009
    %v1060 = vunpack.c.h.b16 %v1009
    %v1061 = vunpack.c.l.b16 %v1010
    %v1062 = vunpack.c.h.b16 %v1010
    %v1063 = vunpack.c.l.b16 %v1011
    %v1064 = vunpack.c.h.b16 %v1011
    %v1065 = vunpack.c.l.b16 %v1012
    %v1066 = vunpack.c.h.b16 %v1012
    %v1067 = vpack.c.b16 %v1035, %v1031
    %v1068 = vpack.c.b16 %v1036, %v1032
    %v1069 = vpack.c.b16 %v1037, %v1033
    %v1070 = vpack.c.b16 %v1038, %v1034
    %v1071 = vpack.c.b16 %v1043, %v1039
    %v1072 = vpack.c.b16 %v1044, %v1040
    %v1073 = vpack.c.b16 %v1045, %v1041
    %v1074 = vpack.c.b16 %v1046, %v1042
    %v1075 = vpack.c.b16 %v1051, %v1047
    %v1076 = vpack.c.b16 %v1052, %v1048
    %v1077 = vpack.c.b16 %v1053, %v1049
    %v1078 = vpack.c.b16 %v1054, %v1050
    %v1079 = vpack.c.b16 %v1059, %v1055
    %v1080 = vpack.c.b16 %v1060, %v1056
    %v1081 = vpack.c.b16 %v1061, %v1057
    %v1082 = vpack.c.b16 %v1062, %v1058
    %v1083 = vpack.c.b16 %v1063, %v1063
    %v1084 = vpack.c.b16 %v1064, %v1064
    %v1085 = vpack.c.b16 %v1065, %v1065
    %v1086 = vpack.c.b16 %v1066, %v1066
    %vm1103 = vcmask 588800
    %v1105 = vsel %vm1103, %v994, 0
    %vm1107 = vcmask 1043456
    %v1109 = vsel %vm1107, %v1083, 0
    %v1112 = vsel %vm1107, %v1084, 0
    %v1115 = vsel %vm1107, %v1085, 0
    %v1118 = vsel %vm1107, %v1086, 0
    %1120 = vmatprep.subr.bf16.mxu0 %v1068
    %1121 = vmatpush1.bf16.msra.mxu0 %v1067
    %1122 = vmatprep.subr.bf16.mxu0 %v1072
    %1123 = vmatpush1.bf16.msra.mxu0 %v1071
    %1124 = vmatprep.subr.bf16.mxu0 %v1076
    %1125 = vmatpush1.bf16.msra.mxu0 %v1075
    %1126 = vmatprep.subr.bf16.mxu0 %v1080
    %1127 = vmatpush1.bf16.msra.mxu0 %v1079
    %1128 = vmatprep.subr.bf16.mxu0 %v1112
    %1129 = vmatpush1.bf16.msra.mxu0 %v1109
    %1130 = vmatprep.subr.bf16.mxu0 0
    %1131 = vmatpush1.bf16.msra.mxu0 0
    %1132 = vmatprep.subr.bf16.mxu0 0
    %1133 = vmatpush1.bf16.msra.mxu0 0
    %1134 = vmatprep.subr.bf16.mxu0 0
    %1135 = vmatpush1.bf16.msra.mxu0 0
    %1136 = vmatprep.subr.bf16.mxu0 0
    %1137 = vmatpush1.bf16.msra.mxu0 0
    %1138 = vmatprep.subr.bf16.mxu0 0
    %1139 = vmatpush1.bf16.msra.mxu0 0
    %1140 = vmatprep.subr.bf16.mxu0 0
    %1141 = vmatpush1.bf16.msra.mxu0 0
    %1142 = vmatprep.subr.bf16.mxu0 0
    %1143 = vmatpush1.bf16.msra.mxu0 0
    %1144 = vmatprep.subr.bf16.mxu0 0
    %1145 = vmatpush1.bf16.msra.mxu0 0
    %1146 = vmatprep.subr.bf16.mxu0 0
    %1147 = vmatpush1.bf16.msra.mxu0 0
    %1148 = vmatprep.subr.bf16.mxu0 0
    %1149 = vmatpush1.bf16.msra.mxu0 0
    %1150 = vmatprep.subr.bf16.mxu0 0
    %1151 = vmatpush1.bf16.msra.mxu0 0
    %1152 = vmatprep.mubr.bf16.mxu0 0
    %1153 = vmatmul.mubr.bf16.gmra.mrb[0].mxu0 %v1105
    %v1154 = vpop.f32.mrb[0].mxu0
    %v1155 = vadd.f32 0.0, %v1154
    %v1156 = vpop.f32.mrb[0].mxu0
    %v1157 = vadd.f32 0.0, %v1156
    %v1158 = vpop.f32.mrb[0].mxu0
    %v1159 = vpop.f32.mrb[0].mxu0
    %1160 = vdwg.mxu0
    %1161 = vmatprep.subr.bf16.mxu0 %v1070
    %1162 = vmatpush1.bf16.msra.mxu0 %v1069
    %1163 = vmatprep.subr.bf16.mxu0 %v1074
    %1164 = vmatpush1.bf16.msra.mxu0 %v1073
    %1165 = vmatprep.subr.bf16.mxu0 %v1078
    %1166 = vmatpush1.bf16.msra.mxu0 %v1077
    %1167 = vmatprep.subr.bf16.mxu0 %v1082
    %1168 = vmatpush1.bf16.msra.mxu0 %v1081
    %1169 = vmatprep.subr.bf16.mxu0 %v1118
    %1170 = vmatpush1.bf16.msra.mxu0 %v1115
    %1171 = vmatprep.subr.bf16.mxu0 0
    %1172 = vmatpush1.bf16.msra.mxu0 0
    %1173 = vmatprep.subr.bf16.mxu0 0
    %1174 = vmatpush1.bf16.msra.mxu0 0
    %1175 = vmatprep.subr.bf16.mxu0 0
    %1176 = vmatpush1.bf16.msra.mxu0 0
    %1177 = vmatprep.subr.bf16.mxu0 0
    %1178 = vmatpush1.bf16.msra.mxu0 0
    %1179 = vmatprep.subr.bf16.mxu0 0
    %1180 = vmatpush1.bf16.msra.mxu0 0
    %1181 = vmatprep.subr.bf16.mxu0 0
    %1182 = vmatpush1.bf16.msra.mxu0 0
    %1183 = vmatprep.subr.bf16.mxu0 0
    %1184 = vmatpush1.bf16.msra.mxu0 0
    %1185 = vmatprep.subr.bf16.mxu0 0
    %1186 = vmatpush1.bf16.msra.mxu0 0
    %1187 = vmatprep.subr.bf16.mxu0 0
    %1188 = vmatpush1.bf16.msra.mxu0 0
    %1189 = vmatprep.subr.bf16.mxu0 0
    %1190 = vmatpush1.bf16.msra.mxu0 0
    %1191 = vmatprep.subr.bf16.mxu0 0
    %1192 = vmatpush1.bf16.msra.mxu0 0
    %1193 = vmatprep.mubr.bf16.mxu0 0
    %1194 = vmatmul.mubr.bf16.gmra.mrb[0].mxu0 %v1105
    %v1195 = vpop.f32.mrb[0].mxu0
    %v1196 = vadd.f32 0.0, %v1195
    %v1197 = vpop.f32.mrb[0].mxu0
    %v1198 = vadd.f32 0.0, %v1197
    %v1199 = vpop.f32.mrb[0].mxu0
    %v1200 = vpop.f32.mrb[0].mxu0
    %1201 = vdwg.mxu0
    %1202 = vst [vmem:[#allocation8] sm:$0xff] %v1155
    %1203 = vst [vmem:[#allocation8 + $0x8] sm:$0xff] %v1157
    %1204 = vst [vmem:[#allocation8 + $0x10] sm:$0xff] %v1196
    %1205 = vst [vmem:[#allocation8 + $0x18] sm:$0xff] %v1198
    // Predicated region
    $region50: #{tpu_custom_call.1} parent=1 // pred_check
      _
    $region51: #{tpu_custom_call.1} parent=1 // pred_check_branch
      %1207 = sbr.rel (0) target = $region53
    $region52: #{tpu_custom_call.1} parent=1 // pred_region
      %s1209 = ssub.s32 512, 512
      %1210 = vsyncadd [#allocation5], %s1209
      %s1212 = sshll.u32 [#allocation8], 4
      %s1213 = int_to_ptr.vmem [resolvable:$true] %s1212
      %1215 = dma.vmem_to_hbm [thread:$0]  %s1213, 512, %s10, [#allocation5]
    $region53: #{tpu_custom_call.1} parent=1 // pred_fallthru
      _
    // Predicated region
    $region54: #{tpu_custom_call.1} parent=1 // pred_check
      _
    $region55: #{tpu_custom_call.1} parent=1 // pred_check_branch
      %1217 = sbr.rel (0) target = $region57
    $region56: #{tpu_custom_call.1} parent=1 // pred_region
      %1218 = dma.done [#allocation5], 512
    $region57: #{tpu_custom_call.1} parent=1 // pred_fallthru
      _
    %1219 = vsyncpa [#allocation4], 1
    %1220 = vsyncpa [#allocation7], 1
    %1221 = vsyncpa [#allocation5], 1

</llo_original>
